<compile_context>
chip_gen: v6e
topology: v6e:2x2x1
jax: 0.10.0
libtpu: 0.0.40
codegen_flags: <defaults>
</compile_context>

<pallas_src>
import functools

import jax
import jax.numpy as jnp
from jax.experimental import pallas as pl
from jax.experimental.pallas import tpu as pltpu


# ----------------------------- helpers -----------------------------------------

def _round_up(v, m):
    return ((v + m - 1) // m) * m


def _pad2d(a, rows, cols):
    return jnp.pad(a, ((0, rows - a.shape[0]), (0, cols - a.shape[1])))


def _pick_tile(n_pad, max_tile):
    """Largest tile (multiple of 128) that keeps node-axis padding <= 25%."""
    for t in (max_tile, 512, 256, 128):
        if t <= max_tile and _round_up(n_pad, t) <= (n_pad * 5) // 4:
            return t
    return 128


def build_normalized_adjacency(edge_index, num_nodes, n_pad=None, dtype=jnp.float32):
    """GCN-normalized dense adjacency D^{-1/2}(A+I)D^{-1/2}, built directly into a
    zero-padded [n_pad, n_pad] buffer of the requested dtype (fused pad+norm+cast).

    edge_index: int32 [2, E] (undirected edges should appear in both directions).
    One-time preprocessing (GCNConv(cached=True) semantics).
    """
    if n_pad is None:
        n_pad = num_nodes
    src, dst = edge_index[0], edge_index[1]
    a = jnp.zeros((n_pad, n_pad), jnp.float32)
    a = a.at[dst, src].set(1.0)                       # message src -> dst
    idx = jnp.arange(num_nodes)
    a = a.at[idx, idx].set(1.0)                       # remaining self-loops (weight 1)
    deg = jnp.sum(a, axis=1)
    d_inv_sqrt = jnp.where(deg > 0, 1.0 / jnp.sqrt(deg), 0.0)
    return (d_inv_sqrt[:, None] * a * d_inv_sqrt[None, :]).astype(dtype)


# ----------------------------- Pallas kernel -----------------------------------

def gcn_agg_kernel(adj_ref, xw_ref, b_ref, out_ref, acc_ref, *,
                   apply_relu, tk, resident_features):
    """Aggregation-only GCN layer step.

    grid = (row_tiles [parallel], adj_col_tiles [arbitrary])
      acc[i]  (k==0)  =  A[i, 0] @ XW[0]
      acc[i]  (k>0)  +=  A[i, k] @ XW[k]     (bf16 operands, f32 accumulate, MXU)
      out[i]  (last)  =  epilogue(acc[i] + b)
    """
    k = pl.program_id(1)

    if resident_features:
        start = pl.multiple_of(k * tk, tk)
        xw = xw_ref[pl.ds(start, tk), :]
    else:
        xw = xw_ref[...]

    contrib = jnp.dot(adj_ref[...], xw, preferred_element_type=jnp.float32)

    @pl.when(k == 0)
    def _():
        acc_ref[...] = contrib

    @pl.when(k > 0)
    def _():
        acc_ref[...] += contrib

    @pl.when(k == pl.num_programs(1) - 1)
    def _():
        y = acc_ref[...] + b_ref[...]
        if apply_relu:
            y = jnp.maximum(y, 0.0)
        out_ref[...] = y.astype(out_ref.dtype)


def gcn_aggregate_layer(adj, xw, b, *, apply_relu, out_dtype, tm, tk):
    """adj: [Np, Np] bf16; xw: [Np, Fout_pad] bf16 (already transformed X@W);
    b: [1, Fout_pad] f32.  Returns A_hat @ XW + b (optionally relu'd)."""
    n = adj.shape[0]
    f_out = xw.shape[1]
    assert n % tm == 0 and n % tk == 0, "node axis must be padded to the tile size"
    grid = (n // tm, n // tk)

    # Pin the aggregated features in VMEM across row tiles when they are small
    # enough (<= 8 MiB); otherwise stream one (tk, f_out) tile per k step.
    xw_bytes = xw.size * xw.dtype.itemsize
    resident = xw_bytes <= 8 * 1024 * 1024
    if resident:
        xw_spec = pl.BlockSpec((n, f_out), lambda i, k: (0, 0))
        xw_traffic = xw_bytes
    else:
        xw_spec = pl.BlockSpec((tk, f_out), lambda i, k: (k, 0))
        xw_traffic = xw_bytes * grid[0]                 # re-streamed per row tile

    flops = 2 * n * n * f_out
    bytes_accessed = (adj.size * adj.dtype.itemsize
                      + xw_traffic
                      + b.size * b.dtype.itemsize
                      + n * f_out * jnp.dtype(out_dtype).itemsize)

    return pl.pallas_call(
        functools.partial(gcn_agg_kernel, apply_relu=apply_relu, tk=tk,
                          resident_features=resident),
        out_shape=jax.ShapeDtypeStruct((n, f_out), out_dtype),
        grid_spec=pltpu.PrefetchScalarGridSpec(
            num_scalar_prefetch=0,
            grid=grid,
            in_specs=[
                pl.BlockSpec((tm, tk), lambda i, k: (i, k)),   # A_hat tile (dominant stream)
                xw_spec,                                       # aggregated features
                pl.BlockSpec((1, f_out), lambda i, k: (0, 0)), # bias (VMEM-resident)
            ],
            out_specs=pl.BlockSpec((tm, f_out), lambda i, k: (i, 0)),
            scratch_shapes=[pltpu.VMEM((tm, f_out), jnp.float32)],
        ),
        compiler_params=pltpu.CompilerParams(
            dimension_semantics=("parallel", "arbitrary"),
            vmem_limit_bytes=48 * 1024 * 1024,
        ),
        cost_estimate=pl.CostEstimate(flops=flops, transcendentals=0,
                                      bytes_accessed=bytes_accessed),
    )(adj, xw, b)


# ----------------------------- forward (module equivalent) ----------------------

def gcn_gae_forward(x, edge_index, w1, b1, w2, b2, *, max_tile=1024):
    """x: [N, in]; edge_index: int32 [2, E]; w1: [in, hid]; b1: [1, hid];
    w2: [hid, out]; b2: [1, out].  Returns Z: [N, out] f32."""
    n, _ = x.shape
    hid = w1.shape[1]
    out_c = w2.shape[1]

    n_pad = _round_up(n, 128)
    tile = _pick_tile(n_pad, max_tile)
    n_pad = _round_up(n_pad, tile)
    hid_pad = _round_up(hid, 128)
    out_pad = _round_up(out_c, 128)

    # Normalized adjacency built once, fused pad+normalize+cast to bf16 (halves the
    # dominant N^2 HBM traffic; zero padding keeps real rows exact).
    adj_p = build_normalized_adjacency(edge_index, n, n_pad, dtype=jnp.bfloat16)

    x_bf = x.astype(jnp.bfloat16)
    w1_bf = w1.astype(jnp.bfloat16)
    w2_p_bf = _pad2d(w2, hid_pad, out_pad).astype(jnp.bfloat16)
    b1_p = _pad2d(b1, 1, hid_pad).astype(jnp.float32)
    b2_p = _pad2d(b2, 1, out_pad).astype(jnp.float32)

    # Transform-first: the feature transforms are single bf16 XLA matmuls with f32
    # accumulation; the Pallas kernels only do adjacency aggregation + epilogue.
    xw1 = jnp.dot(x_bf, w1_bf, preferred_element_type=jnp.float32)
    xw1_p = _pad2d(xw1, n_pad, hid_pad).astype(jnp.bfloat16)

    # Layer 1: H = relu(A_hat @ XW1 + b1), kept lane-dense bf16 for layer 2.
    h = gcn_aggregate_layer(adj_p, xw1_p, b1_p, apply_relu=True,
                            out_dtype=jnp.bfloat16, tm=tile, tk=tile)

    hw2 = jnp.dot(h, w2_p_bf, preferred_element_type=jnp.float32).astype(jnp.bfloat16)

    # Layer 2: Z = A_hat @ HW2 + b2, f32 output.
    z = gcn_aggregate_layer(adj_p, hw2, b2_p, apply_relu=False,
                            out_dtype=jnp.float32, tm=tile, tk=tile)
    return z[:n, :out_c]


def gcn_gae_reference(adj_hat, x, w1, b1, w2, b2):
    h = jnp.maximum(adj_hat @ (x @ w1) + b1, 0.0)
    return adj_hat @ (h @ w2) + b2


# ----------------------------- demo --------------------------------------------

if __name__ == "__main__":
    num_nodes = 16
    in_channels = 8
    hidden_channels = 32
    out_channels = 16

    key = jax.random.PRNGKey(0)
    k_x, k_e, k_w1, k_b1, k_w2, k_b2 = jax.random.split(key, 6)

    x = jax.random.normal(k_x, (num_nodes, in_channels), jnp.float32)

    # Deterministic small undirected graph (each edge in both directions, no self-edges).
    n_und = 24
    src = jax.random.randint(k_e, (n_und,), 0, num_nodes, jnp.int32)
    dst = (src + 1 + jnp.arange(n_und, dtype=jnp.int32) % (num_nodes - 1)) % num_nodes
    edge_index = jnp.stack(
        [jnp.concatenate([src, dst]), jnp.concatenate([dst, src])], axis=0
    )

    # GCNConv parameters (PyG stores weight as [out, in]; pre-transposed to [in, out]).
    w1 = jax.random.normal(k_w1, (in_channels, hidden_channels), jnp.float32) * 0.1
    b1 = jax.random.normal(k_b1, (1, hidden_channels), jnp.float32) * 0.01
    w2 = jax.random.normal(k_w2, (hidden_channels, out_channels), jnp.float32) * 0.1
    b2 = jax.random.normal(k_b2, (1, out_channels), jnp.float32) * 0.01

    fwd = jax.jit(gcn_gae_forward)
    z = fwd(x, edge_index, w1, b1, w2, b2)
    jax.block_until_ready(z)
    assert z.shape == (num_nodes, out_channels)

    # f32 reference (kernel path uses bf16 adjacency / transformed features with
    # f32 MXU accumulation).
    adj_hat = build_normalized_adjacency(edge_index, num_nodes)
    z_ref = gcn_gae_reference(adj_hat, x, w1, b1, w2, b2)
    assert jnp.allclose(z, z_ref, atol=3e-2, rtol=3e-2), \
        f"max abs err {float(jnp.max(jnp.abs(z - z_ref)))}"

    print("KERNEL_OK")
</pallas_src>

<mosaic_0001>
module attributes {stable_mosaic.version = 11 : i64} {
  func.func @gcn_agg_kernel(%arg0: i32, %arg1: i32, %arg2: memref<128x128xbf16, #tpu.memory_space<vmem>>, %arg3: memref<128x128xbf16, #tpu.memory_space<vmem>>, %arg4: memref<1x128xf32, #tpu.memory_space<vmem>>, %arg5: memref<128x128xbf16, #tpu.memory_space<vmem>>, %arg6: memref<128x128xf32, #tpu.memory_space<vmem>>) attributes {dimension_semantics = [#tpu.dimension_semantics<parallel>, #tpu.dimension_semantics<arbitrary>], iteration_bounds = array<i64: 1, 1>, scalar_prefetch = 0 : i64, scratch_operands = 1 : i64, tpu.core_type = #tpu.core_type<tc>, window_params = [{transform_indices = @transform_0, window_bounds = array<i64: 128, 128>}, {pipeline_mode = #tpu.pipeline_mode<synchronous>, transform_indices = @transform_1, window_bounds = array<i64: 128, 128>}, {pipeline_mode = #tpu.pipeline_mode<synchronous>, transform_indices = @transform_2, window_bounds = array<i64: 1, 128>}, {transform_indices = @transform_3, window_bounds = array<i64: 128, 128>}]} {
    %c128_i32 = arith.constant 128 : i32
    %0 = arith.muli %arg1, %c128_i32 : i32
    %1 = tpu.assume_multiple %0, 128 : i32
    %2 = arith.index_cast %1 : i32 to index
    %c0 = arith.constant 0 : index
    %3 = vector.load %arg3[%2, %c0] : memref<128x128xbf16, #tpu.memory_space<vmem>>, vector<128x128xbf16>
    %c0_0 = arith.constant 0 : index
    %c0_1 = arith.constant 0 : index
    %4 = vector.load %arg2[%c0_0, %c0_1] : memref<128x128xbf16, #tpu.memory_space<vmem>>, vector<128x128xbf16>
    %cst = arith.constant dense<0.000000e+00> : vector<128x128xf32>
    %5 = tpu.matmul %4, %3, %cst {dimension_numbers = #tpu.dot_dimension_numbers<[1], [0], [0], [1], [0, 0, 1, 1], [], []>} : vector<128x128xbf16>, vector<128x128xbf16>, vector<128x128xf32> -> vector<128x128xf32>
    %c0_i32 = arith.constant 0 : i32
    %6 = arith.cmpi eq, %arg1, %c0_i32 : i32
    %7 = arith.extui %6 : i1 to i32
    %c0_i32_2 = arith.constant 0 : i32
    %8 = arith.cmpi ne, %7, %c0_i32_2 : i32
    scf.if %8 {
      %c0_7 = arith.constant 0 : index
      %c0_8 = arith.constant 0 : index
      %15 = vector.load %arg6[%c0_7, %c0_8] : memref<128x128xf32, #tpu.memory_space<vmem>>, vector<128x128xf32>
      tpu.vector_store %arg6[%c0_7, %c0_8], %5 {strides = array<i32>} : memref<128x128xf32, #tpu.memory_space<vmem>>, vector<128x128xf32>,
    } else {
    }
    %c0_i32_3 = arith.constant 0 : i32
    %9 = arith.cmpi sgt, %arg1, %c0_i32_3 : i32
    %10 = arith.extui %9 : i1 to i32
    %c0_i32_4 = arith.constant 0 : i32
    %11 = arith.cmpi ne, %10, %c0_i32_4 : i32
    scf.if %11 {
      %c0_7 = arith.constant 0 : index
      %c0_8 = arith.constant 0 : index
      %15 = vector.load %arg6[%c0_7, %c0_8] : memref<128x128xf32, #tpu.memory_space<vmem>>, vector<128x128xf32>
      %16 = arith.addf %15, %5 : vector<128x128xf32>
      %c0_9 = arith.constant 0 : index
      %c0_10 = arith.constant 0 : index
      %17 = vector.load %arg6[%c0_9, %c0_10] : memref<128x128xf32, #tpu.memory_space<vmem>>, vector<128x128xf32>
      tpu.vector_store %arg6[%c0_9, %c0_10], %16 {strides = array<i32>} : memref<128x128xf32, #tpu.memory_space<vmem>>, vector<128x128xf32>,
    } else {
    }
    %c0_i32_5 = arith.constant 0 : i32
    %12 = arith.cmpi eq, %arg1, %c0_i32_5 : i32
    %13 = arith.extui %12 : i1 to i32
    %c0_i32_6 = arith.constant 0 : i32
    %14 = arith.cmpi ne, %13, %c0_i32_6 : i32
    scf.if %14 {
      %c0_7 = arith.constant 0 : index
      %c0_8 = arith.constant 0 : index
      %15 = vector.load %arg6[%c0_7, %c0_8] : memref<128x128xf32, #tpu.memory_space<vmem>>, vector<128x128xf32>
      %c0_9 = arith.constant 0 : index
      %c0_10 = arith.constant 0 : index
      %16 = vector.load %arg4[%c0_9, %c0_10] : memref<1x128xf32, #tpu.memory_space<vmem>>, vector<1x128xf32>
      %17 = vector.broadcast %16 : vector<1x128xf32> to vector<128x128xf32>
      %18 = arith.addf %15, %17 : vector<128x128xf32>
      %cst_11 = arith.constant 0.000000e+00 : f32
      %19 = vector.broadcast %cst_11 : f32 to vector<128x128xf32>
      %20 = arith.maximumf %18, %19 : vector<128x128xf32>
      %21 = arith.truncf %20 : vector<128x128xf32> to vector<128x128xbf16>
      %c0_12 = arith.constant 0 : index
      %c0_13 = arith.constant 0 : index
      %22 = vector.load %arg5[%c0_12, %c0_13] : memref<128x128xbf16, #tpu.memory_space<vmem>>, vector<128x128xbf16>
      tpu.vector_store %arg5[%c0_12, %c0_13], %21 {strides = array<i32>} : memref<128x128xbf16, #tpu.memory_space<vmem>>, vector<128x128xbf16>,
    } else {
    }
    return
  }
  func.func @transform_0(%arg0: i32, %arg1: i32) -> (i32, i32) {
    %c0_i32 = arith.constant 0 : i32
    return %arg0, %arg1 : i32, i32
  }
  func.func @transform_1(%arg0: i32, %arg1: i32) -> (i32, i32) {
    %c0_i32 = arith.constant 0 : i32
    %c0_i32_0 = arith.constant 0 : i32
    %c0_i32_1 = arith.constant 0 : i32
    return %c0_i32, %c0_i32_0 : i32, i32
  }
  func.func @transform_2(%arg0: i32, %arg1: i32) -> (i32, i32) {
    %c0_i32 = arith.constant 0 : i32
    %c0_i32_0 = arith.constant 0 : i32
    %c0_i32_1 = arith.constant 0 : i32
    return %c0_i32, %c0_i32_0 : i32, i32
  }
  func.func @transform_3(%arg0: i32, %arg1: i32) -> (i32, i32) {
    %c0_i32 = arith.constant 0 : i32
    %c0_i32_0 = arith.constant 0 : i32
    return %arg0, %c0_i32 : i32, i32
  }
}

module attributes {stable_mosaic.version = 11 : i64} {
  func.func @gcn_agg_kernel(%arg0: i32, %arg1: i32, %arg2: memref<128x128xbf16, #tpu.memory_space<vmem>>, %arg3: memref<128x128xbf16, #tpu.memory_space<vmem>>, %arg4: memref<1x128xf32, #tpu.memory_space<vmem>>, %arg5: memref<128x128xf32, #tpu.memory_space<vmem>>, %arg6: memref<128x128xf32, #tpu.memory_space<vmem>>) attributes {dimension_semantics = [#tpu.dimension_semantics<parallel>, #tpu.dimension_semantics<arbitrary>], iteration_bounds = array<i64: 1, 1>, scalar_prefetch = 0 : i64, scratch_operands = 1 : i64, tpu.core_type = #tpu.core_type<tc>, window_params = [{transform_indices = @transform_0, window_bounds = array<i64: 128, 128>}, {pipeline_mode = #tpu.pipeline_mode<synchronous>, transform_indices = @transform_1, window_bounds = array<i64: 128, 128>}, {pipeline_mode = #tpu.pipeline_mode<synchronous>, transform_indices = @transform_2, window_bounds = array<i64: 1, 128>}, {transform_indices = @transform_3, window_bounds = array<i64: 128, 128>}]} {
    %c128_i32 = arith.constant 128 : i32
    %0 = arith.muli %arg1, %c128_i32 : i32
    %1 = tpu.assume_multiple %0, 128 : i32
    %2 = arith.index_cast %1 : i32 to index
    %c0 = arith.constant 0 : index
    %3 = vector.load %arg3[%2, %c0] : memref<128x128xbf16, #tpu.memory_space<vmem>>, vector<128x128xbf16>
    %c0_0 = arith.constant 0 : index
    %c0_1 = arith.constant 0 : index
    %4 = vector.load %arg2[%c0_0, %c0_1] : memref<128x128xbf16, #tpu.memory_space<vmem>>, vector<128x128xbf16>
    %cst = arith.constant dense<0.000000e+00> : vector<128x128xf32>
    %5 = tpu.matmul %4, %3, %cst {dimension_numbers = #tpu.dot_dimension_numbers<[1], [0], [0], [1], [0, 0, 1, 1], [], []>} : vector<128x128xbf16>, vector<128x128xbf16>, vector<128x128xf32> -> vector<128x128xf32>
    %c0_i32 = arith.constant 0 : i32
    %6 = arith.cmpi eq, %arg1, %c0_i32 : i32
    %7 = arith.extui %6 : i1 to i32
    %c0_i32_2 = arith.constant 0 : i32
    %8 = arith.cmpi ne, %7, %c0_i32_2 : i32
    scf.if %8 {
      %c0_7 = arith.constant 0 : index
      %c0_8 = arith.constant 0 : index
      %15 = vector.load %arg6[%c0_7, %c0_8] : memref<128x128xf32, #tpu.memory_space<vmem>>, vector<128x128xf32>
      tpu.vector_store %arg6[%c0_7, %c0_8], %5 {strides = array<i32>} : memref<128x128xf32, #tpu.memory_space<vmem>>, vector<128x128xf32>,
    } else {
    }
    %c0_i32_3 = arith.constant 0 : i32
    %9 = arith.cmpi sgt, %arg1, %c0_i32_3 : i32
    %10 = arith.extui %9 : i1 to i32
    %c0_i32_4 = arith.constant 0 : i32
    %11 = arith.cmpi ne, %10, %c0_i32_4 : i32
    scf.if %11 {
      %c0_7 = arith.constant 0 : index
      %c0_8 = arith.constant 0 : index
      %15 = vector.load %arg6[%c0_7, %c0_8] : memref<128x128xf32, #tpu.memory_space<vmem>>, vector<128x128xf32>
      %16 = arith.addf %15, %5 : vector<128x128xf32>
      %c0_9 = arith.constant 0 : index
      %c0_10 = arith.constant 0 : index
      %17 = vector.load %arg6[%c0_9, %c0_10] : memref<128x128xf32, #tpu.memory_space<vmem>>, vector<128x128xf32>
      tpu.vector_store %arg6[%c0_9, %c0_10], %16 {strides = array<i32>} : memref<128x128xf32, #tpu.memory_space<vmem>>, vector<128x128xf32>,
    } else {
    }
    %c0_i32_5 = arith.constant 0 : i32
    %12 = arith.cmpi eq, %arg1, %c0_i32_5 : i32
    %13 = arith.extui %12 : i1 to i32
    %c0_i32_6 = arith.constant 0 : i32
    %14 = arith.cmpi ne, %13, %c0_i32_6 : i32
    scf.if %14 {
      %c0_7 = arith.constant 0 : index
      %c0_8 = arith.constant 0 : index
      %15 = vector.load %arg6[%c0_7, %c0_8] : memref<128x128xf32, #tpu.memory_space<vmem>>, vector<128x128xf32>
      %c0_9 = arith.constant 0 : index
      %c0_10 = arith.constant 0 : index
      %16 = vector.load %arg4[%c0_9, %c0_10] : memref<1x128xf32, #tpu.memory_space<vmem>>, vector<1x128xf32>
      %17 = vector.broadcast %16 : vector<1x128xf32> to vector<128x128xf32>
      %18 = arith.addf %15, %17 : vector<128x128xf32>
      %c0_11 = arith.constant 0 : index
      %c0_12 = arith.constant 0 : index
      %19 = vector.load %arg5[%c0_11, %c0_12] : memref<128x128xf32, #tpu.memory_space<vmem>>, vector<128x128xf32>
      tpu.vector_store %arg5[%c0_11, %c0_12], %18 {strides = array<i32>} : memref<128x128xf32, #tpu.memory_space<vmem>>, vector<128x128xf32>,
    } else {
    }
    return
  }
  func.func @transform_0(%arg0: i32, %arg1: i32) -> (i32, i32) {
    %c0_i32 = arith.constant 0 : i32
    return %arg0, %arg1 : i32, i32
  }
  func.func @transform_1(%arg0: i32, %arg1: i32) -> (i32, i32) {
    %c0_i32 = arith.constant 0 : i32
    %c0_i32_0 = arith.constant 0 : i32
    %c0_i32_1 = arith.constant 0 : i32
    return %c0_i32, %c0_i32_0 : i32, i32
  }
  func.func @transform_2(%arg0: i32, %arg1: i32) -> (i32, i32) {
    %c0_i32 = arith.constant 0 : i32
    %c0_i32_0 = arith.constant 0 : i32
    %c0_i32_1 = arith.constant 0 : i32
    return %c0_i32, %c0_i32_0 : i32, i32
  }
  func.func @transform_3(%arg0: i32, %arg1: i32) -> (i32, i32) {
    %c0_i32 = arith.constant 0 : i32
    %c0_i32_0 = arith.constant 0 : i32
    return %arg0, %c0_i32 : i32, i32
  }
}

</mosaic_0001>

<llo_original>
// kernel: gcn_gae_forward.3
$region0: #{gcn_gae_forward.3}
  #allocation0 [shape = 'u32[]', space=smem, size = 0x4, offset = 0x4, fixed_abs, tag = 'smem constant byte address 0x4 - core index']
  #allocation1 [shape = 'u32[144,128]{1,0:T(1,128)}', space=vmem, size = 0x12000, scoped, tag = 'internal scratch']
  #allocation2 [shape = 'f32[128,128]{1,0:T(8,128)}', space=vmem, size = 0x10000, scoped, tag = 'scratch operand']
  %s0 = inlined_call_operand.vmem [shape: bf16[128,128], index: 0, kind: input, shape index: {}]
  %s1 = inlined_call_operand.vmem [shape: bf16[128,128], index: 1, kind: input, shape index: {}]
  %s2 = inlined_call_operand.vmem [shape: f32[1,128], index: 2, kind: input, shape index: {}]
  %s3 = inlined_call_operand.vmem [shape: f32[128,128], index: 3, kind: output, shape index: {}]
  %s4 = sld [smem:[#allocation0]]
  $region34: #{gcn_gae_forward.3} parent=0
    _
  %s6 = ssub.s32 1, %s4
  %s7 = scalar_select 0, %s6, %s4
  // Predicated region
  $region2: #{gcn_gae_forward.3} parent=0 // pred_check
    _
  $region3: #{gcn_gae_forward.3} parent=0 // pred_check_branch
    %9 = sbr.rel (0) target = $region5
  $region4: #{gcn_gae_forward.3} parent=0 // pred_region
    _
  $region5: #{gcn_gae_forward.3} parent=0 // pred_fallthru
    _
  // Predicated region
  $region6: #{gcn_gae_forward.3} parent=0 // pred_check
    _
  $region7: #{gcn_gae_forward.3} parent=0 // pred_check_branch
    %11 = sbr.rel (0) target = $region9
  $region8: #{gcn_gae_forward.3} parent=0 // pred_region
    _
  $region9: #{gcn_gae_forward.3} parent=0 // pred_fallthru
    _
  // Predicated region
  $region10: #{gcn_gae_forward.3} parent=0 // pred_check
    _
  $region11: #{gcn_gae_forward.3} parent=0 // pred_check_branch
    %13 = sbr.rel (0) target = $region13
  $region12: #{gcn_gae_forward.3} parent=0 // pred_region
    _
  $region13: #{gcn_gae_forward.3} parent=0 // pred_fallthru
    _
  %s15 = smul.u32 0, 128
  %s16 = sshra.s32 %s15, 3
  %s17 = sand.u32 %s15, 7
  %s18 = smul.addr %s16, 4
  %s19 = scalar_lea.vmem %s1, %s18
  %v20 = vld [vmem:[%s19] sm:$0xf]
  %v21 = vld [vmem:[%s19 + $0x4] sm:$0xf]
  %v22 = vld [vmem:[%s19 + $0x8] sm:$0xf]
  %v23 = vld [vmem:[%s19 + $0xc] sm:$0xf]
  %v24 = vld [vmem:[%s19 + $0x10] sm:$0xf]
  %v25 = vld [vmem:[%s19 + $0x14] sm:$0xf]
  %v26 = vld [vmem:[%s19 + $0x18] sm:$0xf]
  %v27 = vld [vmem:[%s19 + $0x1c] sm:$0xf]
  %v28 = vld [vmem:[%s19 + $0x20] sm:$0xf]
  %v29 = vld [vmem:[%s19 + $0x24] sm:$0xf]
  %v30 = vld [vmem:[%s19 + $0x28] sm:$0xf]
  %v31 = vld [vmem:[%s19 + $0x2c] sm:$0xf]
  %v32 = vld [vmem:[%s19 + $0x30] sm:$0xf]
  %v33 = vld [vmem:[%s19 + $0x34] sm:$0xf]
  %v34 = vld [vmem:[%s19 + $0x38] sm:$0xf]
  %v35 = vld [vmem:[%s19 + $0x3c] sm:$0xf]
  %v36 = vld [vmem:[%s0] sm:$0xf]
  %v37 = vld [vmem:[%s0 + $0x4] sm:$0xf]
  %v38 = vld [vmem:[%s0 + $0x8] sm:$0xf]
  %v39 = vld [vmem:[%s0 + $0xc] sm:$0xf]
  %v40 = vld [vmem:[%s0 + $0x10] sm:$0xf]
  %v41 = vld [vmem:[%s0 + $0x14] sm:$0xf]
  %v42 = vld [vmem:[%s0 + $0x18] sm:$0xf]
  %v43 = vld [vmem:[%s0 + $0x1c] sm:$0xf]
  %v44 = vld [vmem:[%s0 + $0x20] sm:$0xf]
  %v45 = vld [vmem:[%s0 + $0x24] sm:$0xf]
  %v46 = vld [vmem:[%s0 + $0x28] sm:$0xf]
  %v47 = vld [vmem:[%s0 + $0x2c] sm:$0xf]
  %v48 = vld [vmem:[%s0 + $0x30] sm:$0xf]
  %v49 = vld [vmem:[%s0 + $0x34] sm:$0xf]
  %v50 = vld [vmem:[%s0 + $0x38] sm:$0xf]
  %v51 = vld [vmem:[%s0 + $0x3c] sm:$0xf]
  %v68 = vunpack.c.l.b16 %v36
  %v69 = vunpack.c.l.b16 %v37
  %v70 = vunpack.c.l.b16 %v38
  %v71 = vunpack.c.l.b16 %v39
  %v72 = vunpack.c.l.b16 %v40
  %v73 = vunpack.c.l.b16 %v41
  %v74 = vunpack.c.l.b16 %v42
  %v75 = vunpack.c.l.b16 %v43
  %v76 = vunpack.c.l.b16 %v44
  %v77 = vunpack.c.l.b16 %v45
  %v78 = vunpack.c.l.b16 %v46
  %v79 = vunpack.c.l.b16 %v47
  %v80 = vunpack.c.l.b16 %v48
  %v81 = vunpack.c.l.b16 %v49
  %v82 = vunpack.c.l.b16 %v50
  %v83 = vunpack.c.l.b16 %v51
  %v84 = vpack.c.b16 %v69, %v68
  %v85 = vpack.c.b16 %v71, %v70
  %v86 = vpack.c.b16 %v73, %v72
  %v87 = vpack.c.b16 %v75, %v74
  %v88 = vpack.c.b16 %v77, %v76
  %v89 = vpack.c.b16 %v79, %v78
  %v90 = vpack.c.b16 %v81, %v80
  %v91 = vpack.c.b16 %v83, %v82
  %v116 = vunpack.c.l.b16 %v20
  %v117 = vunpack.c.l.b16 %v21
  %v118 = vunpack.c.l.b16 %v22
  %v119 = vunpack.c.l.b16 %v23
  %v120 = vunpack.c.l.b16 %v24
  %v121 = vunpack.c.l.b16 %v25
  %v122 = vunpack.c.l.b16 %v26
  %v123 = vunpack.c.l.b16 %v27
  %v124 = vunpack.c.l.b16 %v28
  %v125 = vunpack.c.l.b16 %v29
  %v126 = vunpack.c.l.b16 %v30
  %v127 = vunpack.c.l.b16 %v31
  %v128 = vunpack.c.l.b16 %v32
  %v129 = vunpack.c.l.b16 %v33
  %v130 = vunpack.c.l.b16 %v34
  %v131 = vunpack.c.l.b16 %v35
  %v132 = vpack.c.b16 %v117, %v116
  %v133 = vpack.c.b16 %v119, %v118
  %v134 = vpack.c.b16 %v121, %v120
  %v135 = vpack.c.b16 %v123, %v122
  %v136 = vpack.c.b16 %v125, %v124
  %v137 = vpack.c.b16 %v127, %v126
  %v138 = vpack.c.b16 %v129, %v128
  %v139 = vpack.c.b16 %v131, %v130
  %148 = vmatprep.subr.bf16.mxu0 0
  %149 = vmatpush1.bf16.msra.mxu0 %v139
  %150 = vmatprep.subr.bf16.mxu0 0
  %151 = vmatpush1.bf16.msra.mxu0 %v138
  %152 = vmatprep.subr.bf16.mxu0 0
  %153 = vmatpush1.bf16.msra.mxu0 %v137
  %154 = vmatprep.subr.bf16.mxu0 0
  %155 = vmatpush1.bf16.msra.mxu0 %v136
  %156 = vmatprep.subr.bf16.mxu0 0
  %157 = vmatpush1.bf16.msra.mxu0 %v135
  %158 = vmatprep.subr.bf16.mxu0 0
  %159 = vmatpush1.bf16.msra.mxu0 %v134
  %160 = vmatprep.subr.bf16.mxu0 0
  %161 = vmatpush1.bf16.msra.mxu0 %v133
  %162 = vmatprep.subr.bf16.mxu0 0
  %163 = vmatpush1.bf16.msra.mxu0 %v132
  %164 = vmatprep.subr.bf16.mxu0 0
  %165 = vmatpush2.bf16.msra.mxu0 0
  %166 = vmatprep.subr.bf16.mxu0 0
  %167 = vmatpush2.bf16.msra.mxu0 0
  %168 = vmatprep.subr.bf16.mxu0 0
  %169 = vmatpush2.bf16.msra.mxu0 0
  %170 = vmatprep.subr.bf16.mxu0 0
  %171 = vmatpush2.bf16.msra.mxu0 0
  %172 = vmatprep.subr.bf16.mxu0 0
  %173 = vmatpush2.bf16.msra.mxu0 0
  %174 = vmatprep.subr.bf16.mxu0 0
  %175 = vmatpush2.bf16.msra.mxu0 0
  %176 = vmatprep.subr.bf16.mxu0 0
  %177 = vmatpush2.bf16.msra.mxu0 0
  %178 = vmatprep.subr.bf16.mxu0 0
  %179 = vmatpush2.bf16.msra.mxu0 0
  %180 = vmatprep.mubr.bf16.mxu0 0
  %181 = vmatmul.mubr.bf16.gmra.mxu0 %v84
  %v182 = vpop.f32.mrf.mxu0
  %v183 = vadd.f32 0.0, %v182
  %v184 = vpop.f32.mrf.mxu0
  %v185 = vpop.f32.mrf.mxu0
  %v186 = vadd.f32 0.0, %v185
  %v187 = vpop.f32.mrf.mxu0
  %188 = vmatprep.mubr.bf16.mxu0 0
  %189 = vmatmul.mubr.bf16.gmra.mxu0 %v85
  %v190 = vpop.f32.mrf.mxu0
  %v191 = vadd.f32 0.0, %v190
  %v192 = vpop.f32.mrf.mxu0
  %v193 = vpop.f32.mrf.mxu0
  %v194 = vadd.f32 0.0, %v193
  %v195 = vpop.f32.mrf.mxu0
  %196 = vmatprep.mubr.bf16.mxu0 0
  %197 = vmatmul.mubr.bf16.gmra.mxu0 %v86
  %v198 = vpop.f32.mrf.mxu0
  %v199 = vadd.f32 0.0, %v198
  %v200 = vpop.f32.mrf.mxu0
  %v201 = vpop.f32.mrf.mxu0
  %v202 = vadd.f32 0.0, %v201
  %v203 = vpop.f32.mrf.mxu0
  %204 = vmatprep.mubr.bf16.mxu0 0
  %205 = vmatmul.mubr.bf16.gmra.mxu0 %v87
  %v206 = vpop.f32.mrf.mxu0
  %v207 = vadd.f32 0.0, %v206
  %v208 = vpop.f32.mrf.mxu0
  %v209 = vpop.f32.mrf.mxu0
  %v210 = vadd.f32 0.0, %v209
  %v211 = vpop.f32.mrf.mxu0
  %212 = vmatprep.mubr.bf16.mxu0 0
  %213 = vmatmul.mubr.bf16.gmra.mxu0 %v88
  %v214 = vpop.f32.mrf.mxu0
  %v215 = vadd.f32 0.0, %v214
  %v216 = vpop.f32.mrf.mxu0
  %v217 = vpop.f32.mrf.mxu0
  %v218 = vadd.f32 0.0, %v217
  %v219 = vpop.f32.mrf.mxu0
  %220 = vmatprep.mubr.bf16.mxu0 0
  %221 = vmatmul.mubr.bf16.gmra.mxu0 %v89
  %v222 = vpop.f32.mrf.mxu0
  %v223 = vadd.f32 0.0, %v222
  %v224 = vpop.f32.mrf.mxu0
  %v225 = vpop.f32.mrf.mxu0
  %v226 = vadd.f32 0.0, %v225
  %v227 = vpop.f32.mrf.mxu0
  %228 = vmatprep.mubr.bf16.mxu0 0
  %229 = vmatmul.mubr.bf16.gmra.mxu0 %v90
  %v230 = vpop.f32.mrf.mxu0
  %v231 = vadd.f32 0.0, %v230
  %v232 = vpop.f32.mrf.mxu0
  %v233 = vpop.f32.mrf.mxu0
  %v234 = vadd.f32 0.0, %v233
  %v235 = vpop.f32.mrf.mxu0
  %236 = vmatprep.mubr.bf16.mxu0 0
  %237 = vmatmul.mubr.bf16.gmra.mxu0 %v91
  %v238 = vpop.f32.mrf.mxu0
  %v239 = vadd.f32 0.0, %v238
  %v240 = vpop.f32.mrf.mxu0
  %v241 = vpop.f32.mrf.mxu0
  %v242 = vadd.f32 0.0, %v241
  %v243 = vpop.f32.mrf.mxu0
  %244 = vdwg.mxu0
  %p245 = scmp.eq.s32.totalorder 0, 0
  // Predicated region
  $region14: #{gcn_gae_forward.3} parent=0 // pred_check
    %p246 = pneg %p245
  $region15: #{gcn_gae_forward.3} parent=0 // pred_check_branch
    %248 = sbr.rel (%p246) target = $region17
  $region16: #{gcn_gae_forward.3} parent=0 // pred_region
    %249 = vst [vmem:[#allocation2] sm:$0xff] %v183
    %250 = vst [vmem:[#allocation2 + $0x8] sm:$0xff] %v186
    %251 = vst [vmem:[#allocation2 + $0x10] sm:$0xff] %v191
    %252 = vst [vmem:[#allocation2 + $0x18] sm:$0xff] %v194
    %253 = vst [vmem:[#allocation2 + $0x20] sm:$0xff] %v199
    %254 = vst [vmem:[#allocation2 + $0x28] sm:$0xff] %v202
    %255 = vst [vmem:[#allocation2 + $0x30] sm:$0xff] %v207
    %256 = vst [vmem:[#allocation2 + $0x38] sm:$0xff] %v210
    %257 = vst [vmem:[#allocation2 + $0x40] sm:$0xff] %v215
    %258 = vst [vmem:[#allocation2 + $0x48] sm:$0xff] %v218
    %259 = vst [vmem:[#allocation2 + $0x50] sm:$0xff] %v223
    %260 = vst [vmem:[#allocation2 + $0x58] sm:$0xff] %v226
    %261 = vst [vmem:[#allocation2 + $0x60] sm:$0xff] %v231
    %262 = vst [vmem:[#allocation2 + $0x68] sm:$0xff] %v234
    %263 = vst [vmem:[#allocation2 + $0x70] sm:$0xff] %v239
    %264 = vst [vmem:[#allocation2 + $0x78] sm:$0xff] %v242
  $region17: #{gcn_gae_forward.3} parent=0 // pred_fallthru
    _
  %p265 = scmp.gt.s32.totalorder 0, 0
  // Predicated region
  $region18: #{gcn_gae_forward.3} parent=0 // pred_check
    %p266 = pneg %p265
  $region19: #{gcn_gae_forward.3} parent=0 // pred_check_branch
    %268 = sbr.rel (%p266) target = $region21
  $region20: #{gcn_gae_forward.3} parent=0 // pred_region
    %v269 = vld [vmem:[#allocation2] sm:$0xff]
    %v270 = vld [vmem:[#allocation2 + $0x8] sm:$0xff]
    %v271 = vld [vmem:[#allocation2 + $0x10] sm:$0xff]
    %v272 = vld [vmem:[#allocation2 + $0x18] sm:$0xff]
    %v273 = vld [vmem:[#allocation2 + $0x20] sm:$0xff]
    %v274 = vld [vmem:[#allocation2 + $0x28] sm:$0xff]
    %v275 = vld [vmem:[#allocation2 + $0x30] sm:$0xff]
    %v276 = vld [vmem:[#allocation2 + $0x38] sm:$0xff]
    %v277 = vld [vmem:[#allocation2 + $0x40] sm:$0xff]
    %v278 = vld [vmem:[#allocation2 + $0x48] sm:$0xff]
    %v279 = vld [vmem:[#allocation2 + $0x50] sm:$0xff]
    %v280 = vld [vmem:[#allocation2 + $0x58] sm:$0xff]
    %v281 = vld [vmem:[#allocation2 + $0x60] sm:$0xff]
    %v282 = vld [vmem:[#allocation2 + $0x68] sm:$0xff]
    %v283 = vld [vmem:[#allocation2 + $0x70] sm:$0xff]
    %v284 = vld [vmem:[#allocation2 + $0x78] sm:$0xff]
    %v285 = vadd.f32 %v269, %v183
    %v286 = vadd.f32 %v270, %v186
    %v287 = vadd.f32 %v271, %v191
    %v288 = vadd.f32 %v272, %v194
    %v289 = vadd.f32 %v273, %v199
    %v290 = vadd.f32 %v274, %v202
    %v291 = vadd.f32 %v275, %v207
    %v292 = vadd.f32 %v276, %v210
    %v293 = vadd.f32 %v277, %v215
    %v294 = vadd.f32 %v278, %v218
    %v295 = vadd.f32 %v279, %v223
    %v296 = vadd.f32 %v280, %v226
    %v297 = vadd.f32 %v281, %v231
    %v298 = vadd.f32 %v282, %v234
    %v299 = vadd.f32 %v283, %v239
    %v300 = vadd.f32 %v284, %v242
    %301 = vst [vmem:[#allocation2] sm:$0xff] %v285
    %302 = vst [vmem:[#allocation2 + $0x8] sm:$0xff] %v286
    %303 = vst [vmem:[#allocation2 + $0x10] sm:$0xff] %v287
    %304 = vst [vmem:[#allocation2 + $0x18] sm:$0xff] %v288
    %305 = vst [vmem:[#allocation2 + $0x20] sm:$0xff] %v289
    %306 = vst [vmem:[#allocation2 + $0x28] sm:$0xff] %v290
    %307 = vst [vmem:[#allocation2 + $0x30] sm:$0xff] %v291
    %308 = vst [vmem:[#allocation2 + $0x38] sm:$0xff] %v292
    %309 = vst [vmem:[#allocation2 + $0x40] sm:$0xff] %v293
    %310 = vst [vmem:[#allocation2 + $0x48] sm:$0xff] %v294
    %311 = vst [vmem:[#allocation2 + $0x50] sm:$0xff] %v295
    %312 = vst [vmem:[#allocation2 + $0x58] sm:$0xff] %v296
    %313 = vst [vmem:[#allocation2 + $0x60] sm:$0xff] %v297
    %314 = vst [vmem:[#allocation2 + $0x68] sm:$0xff] %v298
    %315 = vst [vmem:[#allocation2 + $0x70] sm:$0xff] %v299
    %316 = vst [vmem:[#allocation2 + $0x78] sm:$0xff] %v300
  $region21: #{gcn_gae_forward.3} parent=0 // pred_fallthru
    _
  // Predicated region
  $region22: #{gcn_gae_forward.3} parent=0 // pred_check
    %p317 = pneg %p245
  $region23: #{gcn_gae_forward.3} parent=0 // pred_check_branch
    %319 = sbr.rel (%p317) target = $region25
  $region24: #{gcn_gae_forward.3} parent=0 // pred_region
    %v320 = vld [vmem:[#allocation2] sm:$0xff]
    %v321 = vld [vmem:[#allocation2 + $0x8] sm:$0xff]
    %v322 = vld [vmem:[#allocation2 + $0x10] sm:$0xff]
    %v323 = vld [vmem:[#allocation2 + $0x18] sm:$0xff]
    %v324 = vld [vmem:[#allocation2 + $0x20] sm:$0xff]
    %v325 = vld [vmem:[#allocation2 + $0x28] sm:$0xff]
    %v326 = vld [vmem:[#allocation2 + $0x30] sm:$0xff]
    %v327 = vld [vmem:[#allocation2 + $0x38] sm:$0xff]
    %v328 = vld [vmem:[#allocation2 + $0x40] sm:$0xff]
    %v329 = vld [vmem:[#allocation2 + $0x48] sm:$0xff]
    %v330 = vld [vmem:[#allocation2 + $0x50] sm:$0xff]
    %v331 = vld [vmem:[#allocation2 + $0x58] sm:$0xff]
    %v332 = vld [vmem:[#allocation2 + $0x60] sm:$0xff]
    %v333 = vld [vmem:[#allocation2 + $0x68] sm:$0xff]
    %v334 = vld [vmem:[#allocation2 + $0x70] sm:$0xff]
    %v335 = vld [vmem:[#allocation2 + $0x78] sm:$0xff]
    %v336 = vld [vmem:[%s2] sm:$0x1]
    %v338 = vlaneseq
    %v339 = vshrl.u32 %v338, 7
    %v340 = vsub.s32 0, %v339
    %v341 = vrot.slane %v336, %v340
    %v343 = vadd.f32 %v320, %v341
    %v344 = vadd.f32 %v321, %v341
    %v345 = vadd.f32 %v322, %v341
    %v346 = vadd.f32 %v323, %v341
    %v347 = vadd.f32 %v324, %v341
    %v348 = vadd.f32 %v325, %v341
    %v349 = vadd.f32 %v326, %v341
    %v350 = vadd.f32 %v327, %v341
    %v351 = vadd.f32 %v328, %v341
    %v352 = vadd.f32 %v329, %v341
    %v353 = vadd.f32 %v330, %v341
    %v354 = vadd.f32 %v331, %v341
    %v355 = vadd.f32 %v332, %v341
    %v356 = vadd.f32 %v333, %v341
    %v357 = vadd.f32 %v334, %v341
    %v358 = vadd.f32 %v335, %v341
    %359 = vst [vmem:[%s3] sm:$0xff] %v343
    %360 = vst [vmem:[%s3 + $0x8] sm:$0xff] %v344
    %361 = vst [vmem:[%s3 + $0x10] sm:$0xff] %v345
    %362 = vst [vmem:[%s3 + $0x18] sm:$0xff] %v346
    %363 = vst [vmem:[%s3 + $0x20] sm:$0xff] %v347
    %364 = vst [vmem:[%s3 + $0x28] sm:$0xff] %v348
    %365 = vst [vmem:[%s3 + $0x30] sm:$0xff] %v349
    %366 = vst [vmem:[%s3 + $0x38] sm:$0xff] %v350
    %367 = vst [vmem:[%s3 + $0x40] sm:$0xff] %v351
    %368 = vst [vmem:[%s3 + $0x48] sm:$0xff] %v352
    %369 = vst [vmem:[%s3 + $0x50] sm:$0xff] %v353
    %370 = vst [vmem:[%s3 + $0x58] sm:$0xff] %v354
    %371 = vst [vmem:[%s3 + $0x60] sm:$0xff] %v355
    %372 = vst [vmem:[%s3 + $0x68] sm:$0xff] %v356
    %373 = vst [vmem:[%s3 + $0x70] sm:$0xff] %v357
    %374 = vst [vmem:[%s3 + $0x78] sm:$0xff] %v358
  $region25: #{gcn_gae_forward.3} parent=0 // pred_fallthru
    _
  // Predicated region
  $region26: #{gcn_gae_forward.3} parent=0 // pred_check
    _
  $region27: #{gcn_gae_forward.3} parent=0 // pred_check_branch
    %376 = sbr.rel (0) target = $region29
  $region28: #{gcn_gae_forward.3} parent=0 // pred_region
    _
  $region29: #{gcn_gae_forward.3} parent=0 // pred_fallthru
    _
  // Predicated region
  $region30: #{gcn_gae_forward.3} parent=0 // pred_check
    _
  $region31: #{gcn_gae_forward.3} parent=0 // pred_check_branch
    %378 = sbr.rel (0) target = $region33
  $region32: #{gcn_gae_forward.3} parent=0 // pred_region
    _
  $region33: #{gcn_gae_forward.3} parent=0 // pred_fallthru
    _

// kernel: gcn_gae_forward.2
$region0: #{gcn_gae_forward.2}
  #allocation0 [shape = 'u32[]', space=smem, size = 0x4, offset = 0x4, fixed_abs, tag = 'smem constant byte address 0x4 - core index']
  #allocation1 [shape = 'u32[144,128]{1,0:T(1,128)}', space=vmem, size = 0x12000, scoped, tag = 'internal scratch']
  #allocation2 [shape = 'f32[128,128]{1,0:T(8,128)}', space=vmem, size = 0x10000, scoped, tag = 'scratch operand']
  %s0 = inlined_call_operand.vmem [shape: bf16[128,128], index: 0, kind: input, shape index: {}]
  %s1 = inlined_call_operand.vmem [shape: bf16[128,128], index: 1, kind: input, shape index: {}]
  %s2 = inlined_call_operand.vmem [shape: f32[1,128], index: 2, kind: input, shape index: {}]
  %s3 = inlined_call_operand.vmem [shape: bf16[128,128], index: 3, kind: output, shape index: {}]
  %s4 = sld [smem:[#allocation0]]
  $region34: #{gcn_gae_forward.2} parent=0
    _
  %s6 = ssub.s32 1, %s4
  %s7 = scalar_select 0, %s6, %s4
  // Predicated region
  $region2: #{gcn_gae_forward.2} parent=0 // pred_check
    _
  $region3: #{gcn_gae_forward.2} parent=0 // pred_check_branch
    %9 = sbr.rel (0) target = $region5
  $region4: #{gcn_gae_forward.2} parent=0 // pred_region
    _
  $region5: #{gcn_gae_forward.2} parent=0 // pred_fallthru
    _
  // Predicated region
  $region6: #{gcn_gae_forward.2} parent=0 // pred_check
    _
  $region7: #{gcn_gae_forward.2} parent=0 // pred_check_branch
    %11 = sbr.rel (0) target = $region9
  $region8: #{gcn_gae_forward.2} parent=0 // pred_region
    _
  $region9: #{gcn_gae_forward.2} parent=0 // pred_fallthru
    _
  // Predicated region
  $region10: #{gcn_gae_forward.2} parent=0 // pred_check
    _
  $region11: #{gcn_gae_forward.2} parent=0 // pred_check_branch
    %13 = sbr.rel (0) target = $region13
  $region12: #{gcn_gae_forward.2} parent=0 // pred_region
    _
  $region13: #{gcn_gae_forward.2} parent=0 // pred_fallthru
    _
  %s15 = smul.u32 0, 128
  %s16 = sshra.s32 %s15, 3
  %s17 = sand.u32 %s15, 7
  %s18 = smul.addr %s16, 4
  %s19 = scalar_lea.vmem %s1, %s18
  %v20 = vld [vmem:[%s19] sm:$0xf]
  %v21 = vld [vmem:[%s19 + $0x4] sm:$0xf]
  %v22 = vld [vmem:[%s19 + $0x8] sm:$0xf]
  %v23 = vld [vmem:[%s19 + $0xc] sm:$0xf]
  %v24 = vld [vmem:[%s19 + $0x10] sm:$0xf]
  %v25 = vld [vmem:[%s19 + $0x14] sm:$0xf]
  %v26 = vld [vmem:[%s19 + $0x18] sm:$0xf]
  %v27 = vld [vmem:[%s19 + $0x1c] sm:$0xf]
  %v28 = vld [vmem:[%s19 + $0x20] sm:$0xf]
  %v29 = vld [vmem:[%s19 + $0x24] sm:$0xf]
  %v30 = vld [vmem:[%s19 + $0x28] sm:$0xf]
  %v31 = vld [vmem:[%s19 + $0x2c] sm:$0xf]
  %v32 = vld [vmem:[%s19 + $0x30] sm:$0xf]
  %v33 = vld [vmem:[%s19 + $0x34] sm:$0xf]
  %v34 = vld [vmem:[%s19 + $0x38] sm:$0xf]
  %v35 = vld [vmem:[%s19 + $0x3c] sm:$0xf]
  %v36 = vld [vmem:[%s0] sm:$0xf]
  %v37 = vld [vmem:[%s0 + $0x4] sm:$0xf]
  %v38 = vld [vmem:[%s0 + $0x8] sm:$0xf]
  %v39 = vld [vmem:[%s0 + $0xc] sm:$0xf]
  %v40 = vld [vmem:[%s0 + $0x10] sm:$0xf]
  %v41 = vld [vmem:[%s0 + $0x14] sm:$0xf]
  %v42 = vld [vmem:[%s0 + $0x18] sm:$0xf]
  %v43 = vld [vmem:[%s0 + $0x1c] sm:$0xf]
  %v44 = vld [vmem:[%s0 + $0x20] sm:$0xf]
  %v45 = vld [vmem:[%s0 + $0x24] sm:$0xf]
  %v46 = vld [vmem:[%s0 + $0x28] sm:$0xf]
  %v47 = vld [vmem:[%s0 + $0x2c] sm:$0xf]
  %v48 = vld [vmem:[%s0 + $0x30] sm:$0xf]
  %v49 = vld [vmem:[%s0 + $0x34] sm:$0xf]
  %v50 = vld [vmem:[%s0 + $0x38] sm:$0xf]
  %v51 = vld [vmem:[%s0 + $0x3c] sm:$0xf]
  %v68 = vunpack.c.l.b16 %v36
  %v69 = vunpack.c.l.b16 %v37
  %v70 = vunpack.c.l.b16 %v38
  %v71 = vunpack.c.l.b16 %v39
  %v72 = vunpack.c.l.b16 %v40
  %v73 = vunpack.c.l.b16 %v41
  %v74 = vunpack.c.l.b16 %v42
  %v75 = vunpack.c.l.b16 %v43
  %v76 = vunpack.c.l.b16 %v44
  %v77 = vunpack.c.l.b16 %v45
  %v78 = vunpack.c.l.b16 %v46
  %v79 = vunpack.c.l.b16 %v47
  %v80 = vunpack.c.l.b16 %v48
  %v81 = vunpack.c.l.b16 %v49
  %v82 = vunpack.c.l.b16 %v50
  %v83 = vunpack.c.l.b16 %v51
  %v84 = vpack.c.b16 %v69, %v68
  %v85 = vpack.c.b16 %v71, %v70
  %v86 = vpack.c.b16 %v73, %v72
  %v87 = vpack.c.b16 %v75, %v74
  %v88 = vpack.c.b16 %v77, %v76
  %v89 = vpack.c.b16 %v79, %v78
  %v90 = vpack.c.b16 %v81, %v80
  %v91 = vpack.c.b16 %v83, %v82
  %v116 = vunpack.c.l.b16 %v20
  %v117 = vunpack.c.l.b16 %v21
  %v118 = vunpack.c.l.b16 %v22
  %v119 = vunpack.c.l.b16 %v23
  %v120 = vunpack.c.l.b16 %v24
  %v121 = vunpack.c.l.b16 %v25
  %v122 = vunpack.c.l.b16 %v26
  %v123 = vunpack.c.l.b16 %v27
  %v124 = vunpack.c.l.b16 %v28
  %v125 = vunpack.c.l.b16 %v29
  %v126 = vunpack.c.l.b16 %v30
  %v127 = vunpack.c.l.b16 %v31
  %v128 = vunpack.c.l.b16 %v32
  %v129 = vunpack.c.l.b16 %v33
  %v130 = vunpack.c.l.b16 %v34
  %v131 = vunpack.c.l.b16 %v35
  %v132 = vpack.c.b16 %v117, %v116
  %v133 = vpack.c.b16 %v119, %v118
  %v134 = vpack.c.b16 %v121, %v120
  %v135 = vpack.c.b16 %v123, %v122
  %v136 = vpack.c.b16 %v125, %v124
  %v137 = vpack.c.b16 %v127, %v126
  %v138 = vpack.c.b16 %v129, %v128
  %v139 = vpack.c.b16 %v131, %v130
  %148 = vmatprep.subr.bf16.mxu0 0
  %149 = vmatpush1.bf16.msra.mxu0 %v139
  %150 = vmatprep.subr.bf16.mxu0 0
  %151 = vmatpush1.bf16.msra.mxu0 %v138
  %152 = vmatprep.subr.bf16.mxu0 0
  %153 = vmatpush1.bf16.msra.mxu0 %v137
  %154 = vmatprep.subr.bf16.mxu0 0
  %155 = vmatpush1.bf16.msra.mxu0 %v136
  %156 = vmatprep.subr.bf16.mxu0 0
  %157 = vmatpush1.bf16.msra.mxu0 %v135
  %158 = vmatprep.subr.bf16.mxu0 0
  %159 = vmatpush1.bf16.msra.mxu0 %v134
  %160 = vmatprep.subr.bf16.mxu0 0
  %161 = vmatpush1.bf16.msra.mxu0 %v133
  %162 = vmatprep.subr.bf16.mxu0 0
  %163 = vmatpush1.bf16.msra.mxu0 %v132
  %164 = vmatprep.subr.bf16.mxu0 0
  %165 = vmatpush2.bf16.msra.mxu0 0
  %166 = vmatprep.subr.bf16.mxu0 0
  %167 = vmatpush2.bf16.msra.mxu0 0
  %168 = vmatprep.subr.bf16.mxu0 0
  %169 = vmatpush2.bf16.msra.mxu0 0
  %170 = vmatprep.subr.bf16.mxu0 0
  %171 = vmatpush2.bf16.msra.mxu0 0
  %172 = vmatprep.subr.bf16.mxu0 0
  %173 = vmatpush2.bf16.msra.mxu0 0
  %174 = vmatprep.subr.bf16.mxu0 0
  %175 = vmatpush2.bf16.msra.mxu0 0
  %176 = vmatprep.subr.bf16.mxu0 0
  %177 = vmatpush2.bf16.msra.mxu0 0
  %178 = vmatprep.subr.bf16.mxu0 0
  %179 = vmatpush2.bf16.msra.mxu0 0
  %180 = vmatprep.mubr.bf16.mxu0 0
  %181 = vmatmul.mubr.bf16.gmra.mxu0 %v84
  %v182 = vpop.f32.mrf.mxu0
  %v183 = vadd.f32 0.0, %v182
  %v184 = vpop.f32.mrf.mxu0
  %v185 = vpop.f32.mrf.mxu0
  %v186 = vadd.f32 0.0, %v185
  %v187 = vpop.f32.mrf.mxu0
  %188 = vmatprep.mubr.bf16.mxu0 0
  %189 = vmatmul.mubr.bf16.gmra.mxu0 %v85
  %v190 = vpop.f32.mrf.mxu0
  %v191 = vadd.f32 0.0, %v190
  %v192 = vpop.f32.mrf.mxu0
  %v193 = vpop.f32.mrf.mxu0
  %v194 = vadd.f32 0.0, %v193
  %v195 = vpop.f32.mrf.mxu0
  %196 = vmatprep.mubr.bf16.mxu0 0
  %197 = vmatmul.mubr.bf16.gmra.mxu0 %v86
  %v198 = vpop.f32.mrf.mxu0
  %v199 = vadd.f32 0.0, %v198
  %v200 = vpop.f32.mrf.mxu0
  %v201 = vpop.f32.mrf.mxu0
  %v202 = vadd.f32 0.0, %v201
  %v203 = vpop.f32.mrf.mxu0
  %204 = vmatprep.mubr.bf16.mxu0 0
  %205 = vmatmul.mubr.bf16.gmra.mxu0 %v87
  %v206 = vpop.f32.mrf.mxu0
  %v207 = vadd.f32 0.0, %v206
  %v208 = vpop.f32.mrf.mxu0
  %v209 = vpop.f32.mrf.mxu0
  %v210 = vadd.f32 0.0, %v209
  %v211 = vpop.f32.mrf.mxu0
  %212 = vmatprep.mubr.bf16.mxu0 0
  %213 = vmatmul.mubr.bf16.gmra.mxu0 %v88
  %v214 = vpop.f32.mrf.mxu0
  %v215 = vadd.f32 0.0, %v214
  %v216 = vpop.f32.mrf.mxu0
  %v217 = vpop.f32.mrf.mxu0
  %v218 = vadd.f32 0.0, %v217
  %v219 = vpop.f32.mrf.mxu0
  %220 = vmatprep.mubr.bf16.mxu0 0
  %221 = vmatmul.mubr.bf16.gmra.mxu0 %v89
  %v222 = vpop.f32.mrf.mxu0
  %v223 = vadd.f32 0.0, %v222
  %v224 = vpop.f32.mrf.mxu0
  %v225 = vpop.f32.mrf.mxu0
  %v226 = vadd.f32 0.0, %v225
  %v227 = vpop.f32.mrf.mxu0
  %228 = vmatprep.mubr.bf16.mxu0 0
  %229 = vmatmul.mubr.bf16.gmra.mxu0 %v90
  %v230 = vpop.f32.mrf.mxu0
  %v231 = vadd.f32 0.0, %v230
  %v232 = vpop.f32.mrf.mxu0
  %v233 = vpop.f32.mrf.mxu0
  %v234 = vadd.f32 0.0, %v233
  %v235 = vpop.f32.mrf.mxu0
  %236 = vmatprep.mubr.bf16.mxu0 0
  %237 = vmatmul.mubr.bf16.gmra.mxu0 %v91
  %v238 = vpop.f32.mrf.mxu0
  %v239 = vadd.f32 0.0, %v238
  %v240 = vpop.f32.mrf.mxu0
  %v241 = vpop.f32.mrf.mxu0
  %v242 = vadd.f32 0.0, %v241
  %v243 = vpop.f32.mrf.mxu0
  %244 = vdwg.mxu0
  %p245 = scmp.eq.s32.totalorder 0, 0
  // Predicated region
  $region14: #{gcn_gae_forward.2} parent=0 // pred_check
    %p246 = pneg %p245
  $region15: #{gcn_gae_forward.2} parent=0 // pred_check_branch
    %248 = sbr.rel (%p246) target = $region17
  $region16: #{gcn_gae_forward.2} parent=0 // pred_region
    %249 = vst [vmem:[#allocation2] sm:$0xff] %v183
    %250 = vst [vmem:[#allocation2 + $0x8] sm:$0xff] %v186
    %251 = vst [vmem:[#allocation2 + $0x10] sm:$0xff] %v191
    %252 = vst [vmem:[#allocation2 + $0x18] sm:$0xff] %v194
    %253 = vst [vmem:[#allocation2 + $0x20] sm:$0xff] %v199
    %254 = vst [vmem:[#allocation2 + $0x28] sm:$0xff] %v202
    %255 = vst [vmem:[#allocation2 + $0x30] sm:$0xff] %v207
    %256 = vst [vmem:[#allocation2 + $0x38] sm:$0xff] %v210
    %257 = vst [vmem:[#allocation2 + $0x40] sm:$0xff] %v215
    %258 = vst [vmem:[#allocation2 + $0x48] sm:$0xff] %v218
    %259 = vst [vmem:[#allocation2 + $0x50] sm:$0xff] %v223
    %260 = vst [vmem:[#allocation2 + $0x58] sm:$0xff] %v226
    %261 = vst [vmem:[#allocation2 + $0x60] sm:$0xff] %v231
    %262 = vst [vmem:[#allocation2 + $0x68] sm:$0xff] %v234
    %263 = vst [vmem:[#allocation2 + $0x70] sm:$0xff] %v239
    %264 = vst [vmem:[#allocation2 + $0x78] sm:$0xff] %v242
  $region17: #{gcn_gae_forward.2} parent=0 // pred_fallthru
    _
  %p265 = scmp.gt.s32.totalorder 0, 0
  // Predicated region
  $region18: #{gcn_gae_forward.2} parent=0 // pred_check
    %p266 = pneg %p265
  $region19: #{gcn_gae_forward.2} parent=0 // pred_check_branch
    %268 = sbr.rel (%p266) target = $region21
  $region20: #{gcn_gae_forward.2} parent=0 // pred_region
    %v269 = vld [vmem:[#allocation2] sm:$0xff]
    %v270 = vld [vmem:[#allocation2 + $0x8] sm:$0xff]
    %v271 = vld [vmem:[#allocation2 + $0x10] sm:$0xff]
    %v272 = vld [vmem:[#allocation2 + $0x18] sm:$0xff]
    %v273 = vld [vmem:[#allocation2 + $0x20] sm:$0xff]
    %v274 = vld [vmem:[#allocation2 + $0x28] sm:$0xff]
    %v275 = vld [vmem:[#allocation2 + $0x30] sm:$0xff]
    %v276 = vld [vmem:[#allocation2 + $0x38] sm:$0xff]
    %v277 = vld [vmem:[#allocation2 + $0x40] sm:$0xff]
    %v278 = vld [vmem:[#allocation2 + $0x48] sm:$0xff]
    %v279 = vld [vmem:[#allocation2 + $0x50] sm:$0xff]
    %v280 = vld [vmem:[#allocation2 + $0x58] sm:$0xff]
    %v281 = vld [vmem:[#allocation2 + $0x60] sm:$0xff]
    %v282 = vld [vmem:[#allocation2 + $0x68] sm:$0xff]
    %v283 = vld [vmem:[#allocation2 + $0x70] sm:$0xff]
    %v284 = vld [vmem:[#allocation2 + $0x78] sm:$0xff]
    %v285 = vadd.f32 %v269, %v183
    %v286 = vadd.f32 %v270, %v186
    %v287 = vadd.f32 %v271, %v191
    %v288 = vadd.f32 %v272, %v194
    %v289 = vadd.f32 %v273, %v199
    %v290 = vadd.f32 %v274, %v202
    %v291 = vadd.f32 %v275, %v207
    %v292 = vadd.f32 %v276, %v210
    %v293 = vadd.f32 %v277, %v215
    %v294 = vadd.f32 %v278, %v218
    %v295 = vadd.f32 %v279, %v223
    %v296 = vadd.f32 %v280, %v226
    %v297 = vadd.f32 %v281, %v231
    %v298 = vadd.f32 %v282, %v234
    %v299 = vadd.f32 %v283, %v239
    %v300 = vadd.f32 %v284, %v242
    %301 = vst [vmem:[#allocation2] sm:$0xff] %v285
    %302 = vst [vmem:[#allocation2 + $0x8] sm:$0xff] %v286
    %303 = vst [vmem:[#allocation2 + $0x10] sm:$0xff] %v287
    %304 = vst [vmem:[#allocation2 + $0x18] sm:$0xff] %v288
    %305 = vst [vmem:[#allocation2 + $0x20] sm:$0xff] %v289
    %306 = vst [vmem:[#allocation2 + $0x28] sm:$0xff] %v290
    %307 = vst [vmem:[#allocation2 + $0x30] sm:$0xff] %v291
    %308 = vst [vmem:[#allocation2 + $0x38] sm:$0xff] %v292
    %309 = vst [vmem:[#allocation2 + $0x40] sm:$0xff] %v293
    %310 = vst [vmem:[#allocation2 + $0x48] sm:$0xff] %v294
    %311 = vst [vmem:[#allocation2 + $0x50] sm:$0xff] %v295
    %312 = vst [vmem:[#allocation2 + $0x58] sm:$0xff] %v296
    %313 = vst [vmem:[#allocation2 + $0x60] sm:$0xff] %v297
    %314 = vst [vmem:[#allocation2 + $0x68] sm:$0xff] %v298
    %315 = vst [vmem:[#allocation2 + $0x70] sm:$0xff] %v299
    %316 = vst [vmem:[#allocation2 + $0x78] sm:$0xff] %v300
  $region21: #{gcn_gae_forward.2} parent=0 // pred_fallthru
    _
  // Predicated region
  $region22: #{gcn_gae_forward.2} parent=0 // pred_check
    %p317 = pneg %p245
  $region23: #{gcn_gae_forward.2} parent=0 // pred_check_branch
    %319 = sbr.rel (%p317) target = $region25
  $region24: #{gcn_gae_forward.2} parent=0 // pred_region
    %v320 = vld [vmem:[#allocation2] sm:$0xff]
    %v321 = vld [vmem:[#allocation2 + $0x8] sm:$0xff]
    %v322 = vld [vmem:[#allocation2 + $0x10] sm:$0xff]
    %v323 = vld [vmem:[#allocation2 + $0x18] sm:$0xff]
    %v324 = vld [vmem:[#allocation2 + $0x20] sm:$0xff]
    %v325 = vld [vmem:[#allocation2 + $0x28] sm:$0xff]
    %v326 = vld [vmem:[#allocation2 + $0x30] sm:$0xff]
    %v327 = vld [vmem:[#allocation2 + $0x38] sm:$0xff]
    %v328 = vld [vmem:[#allocation2 + $0x40] sm:$0xff]
    %v329 = vld [vmem:[#allocation2 + $0x48] sm:$0xff]
    %v330 = vld [vmem:[#allocation2 + $0x50] sm:$0xff]
    %v331 = vld [vmem:[#allocation2 + $0x58] sm:$0xff]
    %v332 = vld [vmem:[#allocation2 + $0x60] sm:$0xff]
    %v333 = vld [vmem:[#allocation2 + $0x68] sm:$0xff]
    %v334 = vld [vmem:[#allocation2 + $0x70] sm:$0xff]
    %v335 = vld [vmem:[#allocation2 + $0x78] sm:$0xff]
    %v336 = vld [vmem:[%s2] sm:$0x1]
    %v338 = vlaneseq
    %v339 = vshrl.u32 %v338, 7
    %v340 = vsub.s32 0, %v339
    %v341 = vrot.slane %v336, %v340
    %v343 = vadd.f32 %v320, %v341
    %v344 = vadd.f32 %v321, %v341
    %v345 = vadd.f32 %v322, %v341
    %v346 = vadd.f32 %v323, %v341
    %v347 = vadd.f32 %v324, %v341
    %v348 = vadd.f32 %v325, %v341
    %v349 = vadd.f32 %v326, %v341
    %v350 = vadd.f32 %v327, %v341
    %v351 = vadd.f32 %v328, %v341
    %v352 = vadd.f32 %v329, %v341
    %v353 = vadd.f32 %v330, %v341
    %v354 = vadd.f32 %v331, %v341
    %v355 = vadd.f32 %v332, %v341
    %v356 = vadd.f32 %v333, %v341
    %v357 = vadd.f32 %v334, %v341
    %v358 = vadd.f32 %v335, %v341
    %v359 = vmax.f32 %v343, 0.0
    %v360 = vmax.f32 %v344, 0.0
    %v361 = vmax.f32 %v345, 0.0
    %v362 = vmax.f32 %v346, 0.0
    %v363 = vmax.f32 %v347, 0.0
    %v364 = vmax.f32 %v348, 0.0
    %v365 = vmax.f32 %v349, 0.0
    %v366 = vmax.f32 %v350, 0.0
    %v367 = vmax.f32 %v351, 0.0
    %v368 = vmax.f32 %v352, 0.0
    %v369 = vmax.f32 %v353, 0.0
    %v370 = vmax.f32 %v354, 0.0
    %v371 = vmax.f32 %v355, 0.0
    %v372 = vmax.f32 %v356, 0.0
    %v373 = vmax.f32 %v357, 0.0
    %v374 = vmax.f32 %v358, 0.0
    %v375 = vpack.c.bf16 %v360, %v359
    %v376 = vpack.c.bf16 %v362, %v361
    %v377 = vpack.c.bf16 %v364, %v363
    %v378 = vpack.c.bf16 %v366, %v365
    %v379 = vpack.c.bf16 %v368, %v367
    %v380 = vpack.c.bf16 %v370, %v369
    %v381 = vpack.c.bf16 %v372, %v371
    %v382 = vpack.c.bf16 %v374, %v373
    %v391 = vunpack.c.l.b16 %v375
    %v392 = vunpack.c.h.b16 %v375
    %v393 = vunpack.c.l.b16 %v376
    %v394 = vunpack.c.h.b16 %v376
    %v395 = vunpack.c.l.b16 %v377
    %v396 = vunpack.c.h.b16 %v377
    %v397 = vunpack.c.l.b16 %v378
    %v398 = vunpack.c.h.b16 %v378
    %v399 = vunpack.c.l.b16 %v379
    %v400 = vunpack.c.h.b16 %v379
    %v401 = vunpack.c.l.b16 %v380
    %v402 = vunpack.c.h.b16 %v380
    %v403 = vunpack.c.l.b16 %v381
    %v404 = vunpack.c.h.b16 %v381
    %v405 = vunpack.c.l.b16 %v382
    %v406 = vunpack.c.h.b16 %v382
    %v407 = vpack.c.b16 %v391, %v391
    %v408 = vpack.c.b16 %v392, %v392
    %v409 = vpack.c.b16 %v393, %v393
    %v410 = vpack.c.b16 %v394, %v394
    %v411 = vpack.c.b16 %v395, %v395
    %v412 = vpack.c.b16 %v396, %v396
    %v413 = vpack.c.b16 %v397, %v397
    %v414 = vpack.c.b16 %v398, %v398
    %v415 = vpack.c.b16 %v399, %v399
    %v416 = vpack.c.b16 %v400, %v400
    %v417 = vpack.c.b16 %v401, %v401
    %v418 = vpack.c.b16 %v402, %v402
    %v419 = vpack.c.b16 %v403, %v403
    %v420 = vpack.c.b16 %v404, %v404
    %v421 = vpack.c.b16 %v405, %v405
    %v422 = vpack.c.b16 %v406, %v406
    %439 = vst [vmem:[%s3] sm:$0xf] %v407
    %440 = vst [vmem:[%s3 + $0x4] sm:$0xf] %v408
    %441 = vst [vmem:[%s3 + $0x8] sm:$0xf] %v409
    %442 = vst [vmem:[%s3 + $0xc] sm:$0xf] %v410
    %443 = vst [vmem:[%s3 + $0x10] sm:$0xf] %v411
    %444 = vst [vmem:[%s3 + $0x14] sm:$0xf] %v412
    %445 = vst [vmem:[%s3 + $0x18] sm:$0xf] %v413
    %446 = vst [vmem:[%s3 + $0x1c] sm:$0xf] %v414
    %447 = vst [vmem:[%s3 + $0x20] sm:$0xf] %v415
    %448 = vst [vmem:[%s3 + $0x24] sm:$0xf] %v416
    %449 = vst [vmem:[%s3 + $0x28] sm:$0xf] %v417
    %450 = vst [vmem:[%s3 + $0x2c] sm:$0xf] %v418
    %451 = vst [vmem:[%s3 + $0x30] sm:$0xf] %v419
    %452 = vst [vmem:[%s3 + $0x34] sm:$0xf] %v420
    %453 = vst [vmem:[%s3 + $0x38] sm:$0xf] %v421
    %454 = vst [vmem:[%s3 + $0x3c] sm:$0xf] %v422
  $region25: #{gcn_gae_forward.2} parent=0 // pred_fallthru
    _
  // Predicated region
  $region26: #{gcn_gae_forward.2} parent=0 // pred_check
    _
  $region27: #{gcn_gae_forward.2} parent=0 // pred_check_branch
    %456 = sbr.rel (0) target = $region29
  $region28: #{gcn_gae_forward.2} parent=0 // pred_region
    _
  $region29: #{gcn_gae_forward.2} parent=0 // pred_fallthru
    _
  // Predicated region
  $region30: #{gcn_gae_forward.2} parent=0 // pred_check
    _
  $region31: #{gcn_gae_forward.2} parent=0 // pred_check_branch
    %458 = sbr.rel (0) target = $region33
  $region32: #{gcn_gae_forward.2} parent=0 // pred_region
    _
  $region33: #{gcn_gae_forward.2} parent=0 // pred_fallthru
    _

</llo_original>
